<compile_context>
chip_gen: v5e
topology: v5e:2x2
jax: 0.10.0
libtpu: 0.0.40
codegen_flags: <defaults>
</compile_context>

<pallas_src>
import jax
import jax.numpy as jnp
from jax.experimental import pallas as pl
from jax.experimental.pallas import tpu as pltpu


def qnetwork_kernel(x_ref, w1_ref, wstk_ref, w3_ref, w4_ref, b_ref, out_ref):
    """Fused forward: relu(xW+b) x5, then final linear (no activation).

    x_ref   : (TB, SDP)   f32        batch tile, state padded to SDP (<=16 here)
    w1_ref  : (SDP, 128)  f32/bf16   fc1 weight (out padded to 128)
    wstk_ref: (384, 128)  f32/bf16   rows [0:128]=W2, [128:256]=W5, [256:384]=W6
    w3_ref  : (128, 256)  f32/bf16
    w4_ref  : (256, 128)  f32/bf16
    b_ref   : (8, 256)    f32        row i holds bias i, zero-padded on lanes
    out_ref : (TB, 128)   f32        lane-dense output (action dims in cols [:A])
    """
    mm_dtype = w1_ref.dtype
    h = x_ref[...].astype(mm_dtype)  # single input cast (no-op if f32)

    def layer(h, w, bias_row, width, relu=True):
        # bf16 (or f32) MXU operands, f32 accumulation, f32 bias/ReLU (v5e-safe).
        y = jnp.dot(h, w, preferred_element_type=jnp.float32)
        y = y + b_ref[bias_row:bias_row + 1, 0:width]
        if relu:
            y = jnp.maximum(y, 0.0)
            y = y.astype(mm_dtype)   # re-pack once, as next matmul operand
        return y

    h = layer(h, w1_ref[...],          0, 128)              # fc1: state -> 64 (pad 128)
    h = layer(h, wstk_ref[0:128, :],   1, 128)              # fc2: 64  -> 128
    h = layer(h, w3_ref[...],          2, 256)              # fc3: 128 -> 256
    h = layer(h, w4_ref[...],          3, 128)              # fc4: 256 -> 128
    h = layer(h, wstk_ref[128:256, :], 4, 128)              # fc5: 128 -> 64 (pad 128)
    y = layer(h, wstk_ref[256:384, :], 5, 128, relu=False)  # fc6: 64  -> actions (pad 128)
    out_ref[...] = y.astype(out_ref.dtype)


def _pad2(a, rows, cols):
    return jnp.pad(a, ((0, rows - a.shape[0]), (0, cols - a.shape[1])))


def _default_block_batch(batch):
    """Batch-tile heuristic: 1 tile for small batch; >=2 balanced, even-count
    tiles (for v7x 2-TC sharding) capped at 512 rows for larger batch."""
    rounded = -(-batch // 8) * 8
    if rounded < 128:
        return max(rounded, 8)
    tiles = max(2, -(-rounded // 512))
    tiles += tiles % 2                      # even tile count -> balanced TCs
    per_tile = -(-rounded // tiles)
    return -(-per_tile // 8) * 8


def qnetwork_forward(x, params, *, block_batch=None, matmul_dtype=jnp.bfloat16):
    """x: (B, state_dims) f32.  params: 6 x (W, b) with W (in, out), b (1, out)."""
    batch, state_dims = x.shape
    action_dims = params[-1][0].shape[1]
    assert state_dims <= 128 and action_dims <= 128, "kernel assumes dims <= 128"

    f32 = jnp.float32
    # state feature dim padded only to a multiple of 16 (bf16 sublane tile),
    # NOT to 128 lanes -> ~8-16x less input HBM traffic than full-lane padding.
    sdp = -(-state_dims // 16) * 16

    # --- pad + pack parameters ---
    w1 = _pad2(jnp.asarray(params[0][0], f32), sdp, 128).astype(matmul_dtype)
    w2 = _pad2(jnp.asarray(params[1][0], f32), 128, 128)
    w3 = _pad2(jnp.asarray(params[2][0], f32), 128, 256).astype(matmul_dtype)
    w4 = _pad2(jnp.asarray(params[3][0], f32), 256, 128).astype(matmul_dtype)
    w5 = _pad2(jnp.asarray(params[4][0], f32), 128, 128)
    w6 = _pad2(jnp.asarray(params[5][0], f32), 128, 128)
    wstack = jnp.concatenate([w2, w5, w6], axis=0).astype(matmul_dtype)  # (384,128)

    bstack = jnp.zeros((8, 256), f32)
    for i, (_, b) in enumerate(params):
        bvec = jnp.asarray(b, f32).reshape(-1)
        bstack = bstack.at[i, : bvec.shape[0]].set(bvec)

    # --- batch tiling ---
    if block_batch is None:
        block_batch = _default_block_batch(batch)
    assert block_batch % 8 == 0
    padded_batch = -(-batch // block_batch) * block_batch

    xp = jnp.pad(x.astype(f32),
                 ((0, padded_batch - batch), (0, sdp - state_dims)))

    resident = lambda i: (0, 0)  # weights/biases stay in VMEM across batch tiles

    out = pl.pallas_call(
        qnetwork_kernel,
        out_shape=jax.ShapeDtypeStruct((padded_batch, 128), jnp.float32),
        grid=(padded_batch // block_batch,),
        in_specs=[
            pl.BlockSpec((block_batch, sdp), lambda i: (i, 0)),  # x (narrow lanes)
            pl.BlockSpec((sdp, 128), resident),                  # W1
            pl.BlockSpec((384, 128), resident),                  # W2/W5/W6 stack
            pl.BlockSpec((128, 256), resident),                  # W3
            pl.BlockSpec((256, 128), resident),                  # W4
            pl.BlockSpec((8, 256), resident),                    # biases (f32)
        ],
        out_specs=pl.BlockSpec((block_batch, 128), lambda i: (i, 0)),
        compiler_params=pltpu.CompilerParams(
            dimension_semantics=("parallel",),  # shards batch tiles over v7x's 2 TCs
        ),
    )(xp, w1, wstack, w3, w4, bstack)

    # Padded batch rows / lanes hold garbage (relu(bias) chains) — slice them off.
    return out[:batch, :action_dims]


def init_params(key, state_dims, action_dims):
    """Deterministic init matching the layer shapes of the PyTorch module."""
    sizes = [state_dims, 64, 128, 256, 128, 64, action_dims]
    params = []
    for i in range(len(sizes) - 1):
        fan_in, fan_out = sizes[i], sizes[i + 1]
        key, kw, kb = jax.random.split(key, 3)
        bound = 1.0 / jnp.sqrt(jnp.float32(fan_in))  # PyTorch-style uniform bound
        w = jax.random.uniform(kw, (fan_in, fan_out), jnp.float32, -bound, bound)
        b = jax.random.uniform(kb, (1, fan_out), jnp.float32, -bound, bound)
        params.append((w, b))
    return params


def reference_forward(x, params):
    """Pure-JAX reference for correctness checking."""
    h = x
    for i, (w, b) in enumerate(params):
        h = h @ w + b
        if i < len(params) - 1:
            h = jnp.maximum(h, 0.0)
    return h


if __name__ == "__main__":
    state_dims = 8
    action_dims = 4

    key = jax.random.PRNGKey(0)
    key, kx = jax.random.split(key)
    params = init_params(key, state_dims, action_dims)

    # 1) Exactness of the fused/padded structure: f32 matmul path, single tile.
    batch = 8
    x = jax.random.normal(kx, (batch, state_dims), jnp.float32)
    out = jax.block_until_ready(
        qnetwork_forward(x, params, matmul_dtype=jnp.float32))
    ref = reference_forward(x, params)
    assert out.shape == (batch, action_dims)
    assert jnp.allclose(out, ref, atol=1e-4, rtol=1e-4), "f32 path mismatch (batch=8)"

    # 2) bf16 default path over a multi-tile grid (resident weights), looser tol.
    key, kx2 = jax.random.split(key)
    batch2 = 48
    x2 = jax.random.normal(kx2, (batch2, state_dims), jnp.float32)
    out2 = jax.block_until_ready(qnetwork_forward(x2, params, block_batch=16))
    ref2 = reference_forward(x2, params)
    assert out2.shape == (batch2, action_dims)
    assert jnp.allclose(out2, ref2, atol=5e-2, rtol=5e-2), "bf16 path mismatch (batch=48)"

    # 3) Default block_batch heuristic: batch>=128 -> even number of tiles (2 here).
    key, kx3 = jax.random.split(key)
    batch3 = 160
    x3 = jax.random.normal(kx3, (batch3, state_dims), jnp.float32)
    out3 = jax.block_until_ready(qnetwork_forward(x3, params))
    ref3 = reference_forward(x3, params)
    assert out3.shape == (batch3, action_dims)
    assert jnp.allclose(out3, ref3, atol=5e-2, rtol=5e-2), "bf16 path mismatch (batch=160)"

    print("KERNEL_OK")
</pallas_src>

<mosaic_0001>
module attributes {stable_mosaic.version = 11 : i64} {
  func.func @qnetwork_kernel(%arg0: i32, %arg1: memref<8x16xf32, #tpu.memory_space<vmem>>, %arg2: memref<16x128xf32, #tpu.memory_space<vmem>>, %arg3: memref<384x128xf32, #tpu.memory_space<vmem>>, %arg4: memref<128x256xf32, #tpu.memory_space<vmem>>, %arg5: memref<256x128xf32, #tpu.memory_space<vmem>>, %arg6: memref<8x256xf32, #tpu.memory_space<vmem>>, %arg7: memref<8x128xf32, #tpu.memory_space<vmem>>) attributes {dimension_semantics = [#tpu.dimension_semantics<parallel>], iteration_bounds = array<i64: 1>, scalar_prefetch = 0 : i64, scratch_operands = 0 : i64, tpu.core_type = #tpu.core_type<tc>, window_params = [{transform_indices = @transform_0, window_bounds = array<i64: 8, 16>}, {pipeline_mode = #tpu.pipeline_mode<synchronous>, transform_indices = @transform_1, window_bounds = array<i64: 16, 128>}, {pipeline_mode = #tpu.pipeline_mode<synchronous>, transform_indices = @transform_2, window_bounds = array<i64: 384, 128>}, {pipeline_mode = #tpu.pipeline_mode<synchronous>, transform_indices = @transform_3, window_bounds = array<i64: 128, 256>}, {pipeline_mode = #tpu.pipeline_mode<synchronous>, transform_indices = @transform_4, window_bounds = array<i64: 256, 128>}, {pipeline_mode = #tpu.pipeline_mode<synchronous>, transform_indices = @transform_5, window_bounds = array<i64: 8, 256>}, {transform_indices = @transform_6, window_bounds = array<i64: 8, 128>}]} {
    %c0 = arith.constant 0 : index
    %c0_0 = arith.constant 0 : index
    %0 = vector.load %arg1[%c0, %c0_0] : memref<8x16xf32, #tpu.memory_space<vmem>>, vector<8x16xf32>
    %c0_1 = arith.constant 0 : index
    %c0_2 = arith.constant 0 : index
    %1 = vector.load %arg2[%c0_1, %c0_2] : memref<16x128xf32, #tpu.memory_space<vmem>>, vector<16x128xf32>
    %cst = arith.constant dense<0.000000e+00> : vector<8x128xf32>
    %2 = tpu.matmul %0, %1, %cst {dimension_numbers = #tpu.dot_dimension_numbers<[1], [0], [0], [1], [0, 0, 1, 1], [], []>} : vector<8x16xf32>, vector<16x128xf32>, vector<8x128xf32> -> vector<8x128xf32>
    %c0_3 = arith.constant 0 : index
    %c0_4 = arith.constant 0 : index
    %3 = vector.load %arg6[%c0_3, %c0_4] : memref<8x256xf32, #tpu.memory_space<vmem>>, vector<1x128xf32>
    %4 = vector.broadcast %3 : vector<1x128xf32> to vector<8x128xf32>
    %5 = arith.addf %2, %4 : vector<8x128xf32>
    %cst_5 = arith.constant 0.000000e+00 : f32
    %6 = vector.broadcast %cst_5 : f32 to vector<8x128xf32>
    %7 = arith.maximumf %5, %6 : vector<8x128xf32>
    %c0_6 = arith.constant 0 : index
    %c0_7 = arith.constant 0 : index
    %8 = vector.load %arg3[%c0_6, %c0_7] : memref<384x128xf32, #tpu.memory_space<vmem>>, vector<128x128xf32>
    %cst_8 = arith.constant dense<0.000000e+00> : vector<8x128xf32>
    %9 = tpu.matmul %7, %8, %cst_8 {dimension_numbers = #tpu.dot_dimension_numbers<[1], [0], [0], [1], [0, 0, 1, 1], [], []>} : vector<8x128xf32>, vector<128x128xf32>, vector<8x128xf32> -> vector<8x128xf32>
    %c1 = arith.constant 1 : index
    %c0_9 = arith.constant 0 : index
    %10 = vector.load %arg6[%c1, %c0_9] : memref<8x256xf32, #tpu.memory_space<vmem>>, vector<1x128xf32>
    %11 = vector.broadcast %10 : vector<1x128xf32> to vector<8x128xf32>
    %12 = arith.addf %9, %11 : vector<8x128xf32>
    %cst_10 = arith.constant 0.000000e+00 : f32
    %13 = vector.broadcast %cst_10 : f32 to vector<8x128xf32>
    %14 = arith.maximumf %12, %13 : vector<8x128xf32>
    %c0_11 = arith.constant 0 : index
    %c0_12 = arith.constant 0 : index
    %15 = vector.load %arg4[%c0_11, %c0_12] : memref<128x256xf32, #tpu.memory_space<vmem>>, vector<128x256xf32>
    %cst_13 = arith.constant dense<0.000000e+00> : vector<8x256xf32>
    %16 = tpu.matmul %14, %15, %cst_13 {dimension_numbers = #tpu.dot_dimension_numbers<[1], [0], [0], [1], [0, 0, 1, 1], [], []>} : vector<8x128xf32>, vector<128x256xf32>, vector<8x256xf32> -> vector<8x256xf32>
    %c2 = arith.constant 2 : index
    %c0_14 = arith.constant 0 : index
    %17 = vector.load %arg6[%c2, %c0_14] : memref<8x256xf32, #tpu.memory_space<vmem>>, vector<1x256xf32>
    %18 = vector.broadcast %17 : vector<1x256xf32> to vector<8x256xf32>
    %19 = arith.addf %16, %18 : vector<8x256xf32>
    %cst_15 = arith.constant 0.000000e+00 : f32
    %20 = vector.broadcast %cst_15 : f32 to vector<8x256xf32>
    %21 = arith.maximumf %19, %20 : vector<8x256xf32>
    %c0_16 = arith.constant 0 : index
    %c0_17 = arith.constant 0 : index
    %22 = vector.load %arg5[%c0_16, %c0_17] : memref<256x128xf32, #tpu.memory_space<vmem>>, vector<256x128xf32>
    %cst_18 = arith.constant dense<0.000000e+00> : vector<8x128xf32>
    %23 = tpu.matmul %21, %22, %cst_18 {dimension_numbers = #tpu.dot_dimension_numbers<[1], [0], [0], [1], [0, 0, 1, 1], [], []>} : vector<8x256xf32>, vector<256x128xf32>, vector<8x128xf32> -> vector<8x128xf32>
    %c3 = arith.constant 3 : index
    %c0_19 = arith.constant 0 : index
    %24 = vector.load %arg6[%c3, %c0_19] : memref<8x256xf32, #tpu.memory_space<vmem>>, vector<1x128xf32>
    %25 = vector.broadcast %24 : vector<1x128xf32> to vector<8x128xf32>
    %26 = arith.addf %23, %25 : vector<8x128xf32>
    %cst_20 = arith.constant 0.000000e+00 : f32
    %27 = vector.broadcast %cst_20 : f32 to vector<8x128xf32>
    %28 = arith.maximumf %26, %27 : vector<8x128xf32>
    %c128 = arith.constant 128 : index
    %c0_21 = arith.constant 0 : index
    %29 = vector.load %arg3[%c128, %c0_21] : memref<384x128xf32, #tpu.memory_space<vmem>>, vector<128x128xf32>
    %cst_22 = arith.constant dense<0.000000e+00> : vector<8x128xf32>
    %30 = tpu.matmul %28, %29, %cst_22 {dimension_numbers = #tpu.dot_dimension_numbers<[1], [0], [0], [1], [0, 0, 1, 1], [], []>} : vector<8x128xf32>, vector<128x128xf32>, vector<8x128xf32> -> vector<8x128xf32>
    %c4 = arith.constant 4 : index
    %c0_23 = arith.constant 0 : index
    %31 = vector.load %arg6[%c4, %c0_23] : memref<8x256xf32, #tpu.memory_space<vmem>>, vector<1x128xf32>
    %32 = vector.broadcast %31 : vector<1x128xf32> to vector<8x128xf32>
    %33 = arith.addf %30, %32 : vector<8x128xf32>
    %cst_24 = arith.constant 0.000000e+00 : f32
    %34 = vector.broadcast %cst_24 : f32 to vector<8x128xf32>
    %35 = arith.maximumf %33, %34 : vector<8x128xf32>
    %c256 = arith.constant 256 : index
    %c0_25 = arith.constant 0 : index
    %36 = vector.load %arg3[%c256, %c0_25] : memref<384x128xf32, #tpu.memory_space<vmem>>, vector<128x128xf32>
    %cst_26 = arith.constant dense<0.000000e+00> : vector<8x128xf32>
    %37 = tpu.matmul %35, %36, %cst_26 {dimension_numbers = #tpu.dot_dimension_numbers<[1], [0], [0], [1], [0, 0, 1, 1], [], []>} : vector<8x128xf32>, vector<128x128xf32>, vector<8x128xf32> -> vector<8x128xf32>
    %c5 = arith.constant 5 : index
    %c0_27 = arith.constant 0 : index
    %38 = vector.load %arg6[%c5, %c0_27] : memref<8x256xf32, #tpu.memory_space<vmem>>, vector<1x128xf32>
    %39 = vector.broadcast %38 : vector<1x128xf32> to vector<8x128xf32>
    %40 = arith.addf %37, %39 : vector<8x128xf32>
    %c0_28 = arith.constant 0 : index
    %c0_29 = arith.constant 0 : index
    %41 = vector.load %arg7[%c0_28, %c0_29] : memref<8x128xf32, #tpu.memory_space<vmem>>, vector<8x128xf32>
    tpu.vector_store %arg7[%c0_28, %c0_29], %40 {strides = array<i32>} : memref<8x128xf32, #tpu.memory_space<vmem>>, vector<8x128xf32>,
    return
  }
  func.func @transform_0(%arg0: i32) -> (i32, i32) {
    %c0_i32 = arith.constant 0 : i32
    %c0_i32_0 = arith.constant 0 : i32
    return %arg0, %c0_i32 : i32, i32
  }
  func.func @transform_1(%arg0: i32) -> (i32, i32) {
    %c0_i32 = arith.constant 0 : i32
    %c0_i32_0 = arith.constant 0 : i32
    %c0_i32_1 = arith.constant 0 : i32
    return %c0_i32, %c0_i32_0 : i32, i32
  }
  func.func @transform_2(%arg0: i32) -> (i32, i32) {
    %c0_i32 = arith.constant 0 : i32
    %c0_i32_0 = arith.constant 0 : i32
    %c0_i32_1 = arith.constant 0 : i32
    return %c0_i32, %c0_i32_0 : i32, i32
  }
  func.func @transform_3(%arg0: i32) -> (i32, i32) {
    %c0_i32 = arith.constant 0 : i32
    %c0_i32_0 = arith.constant 0 : i32
    %c0_i32_1 = arith.constant 0 : i32
    return %c0_i32, %c0_i32_0 : i32, i32
  }
  func.func @transform_4(%arg0: i32) -> (i32, i32) {
    %c0_i32 = arith.constant 0 : i32
    %c0_i32_0 = arith.constant 0 : i32
    %c0_i32_1 = arith.constant 0 : i32
    return %c0_i32, %c0_i32_0 : i32, i32
  }
  func.func @transform_5(%arg0: i32) -> (i32, i32) {
    %c0_i32 = arith.constant 0 : i32
    %c0_i32_0 = arith.constant 0 : i32
    %c0_i32_1 = arith.constant 0 : i32
    return %c0_i32, %c0_i32_0 : i32, i32
  }
  func.func @transform_6(%arg0: i32) -> (i32, i32) {
    %c0_i32 = arith.constant 0 : i32
    %c0_i32_0 = arith.constant 0 : i32
    return %arg0, %c0_i32 : i32, i32
  }
}

</mosaic_0001>

<llo_original>
// kernel: tpu_custom_call.1
$region0: #{tpu_custom_call.1}
  #allocation0 [shape = 'u32[]', space=smem, size = 0x4, offset = 0x4, fixed_abs, tag = 'smem constant byte address 0x4 - core index']
  #allocation1 [shape = 'u32[72,128]{1,0:T(1,128)}', space=vmem, size = 0x9000, scoped, tag = 'internal scratch']
  %s0 = inlined_call_operand.hbm [shape: f32[8,16], index: 0, kind: input, shape index: {}]
  %s1 = inlined_call_operand.hbm [shape: f32[16,128], index: 1, kind: input, shape index: {}]
  %s2 = inlined_call_operand.hbm [shape: f32[384,128], index: 2, kind: input, shape index: {}]
  %s3 = inlined_call_operand.hbm [shape: f32[128,256], index: 3, kind: input, shape index: {}]
  %s4 = inlined_call_operand.hbm [shape: f32[256,128], index: 4, kind: input, shape index: {}]
  %s5 = inlined_call_operand.hbm [shape: f32[8,256], index: 5, kind: input, shape index: {}]
  %s6 = inlined_call_operand.hbm [shape: f32[8,128], index: 6, kind: output, shape index: {}]
  %s7 = sld [smem:[#allocation0]]
  $region58: #{tpu_custom_call.1} parent=0
    _
  %s9 = ssub.s32 1, %s7
  %s10 = scalar_select 0, %s9, %s7
  $region1: #{tpu_custom_call.1} parent=0
    #allocation2 [shape = 'u8[4096]{0}', space=vmem, size = 0x1000, scoped, tag = 'input window, operand 0, single buffered']
    #allocation3 [shape = 's32[1]{0}', space=sflag, size = 0x4, scoped, tag = 'scoped memory for tpu_custom_call.1']
    #allocation4 [shape = 's32[1]{0}', space=sflag, size = 0x4, scoped, tag = 'scoped memory for tpu_custom_call.1']
    #allocation5 [shape = 'u8[8192]{0}', space=vmem, size = 0x2000, scoped, tag = 'input window, operand 1, single buffered']
    #allocation6 [shape = 's32[1]{0}', space=sflag, size = 0x4, scoped, tag = 'scoped memory for tpu_custom_call.1']
    #allocation7 [shape = 'u8[196608]{0}', space=vmem, size = 0x30000, scoped, tag = 'input window, operand 2, single buffered']
    #allocation8 [shape = 'u8[131072]{0}', space=vmem, size = 0x20000, scoped, tag = 'input window, operand 3, single buffered']
    #allocation9 [shape = 's32[1]{0}', space=sflag, size = 0x4, scoped, tag = 'scoped memory for tpu_custom_call.1']
    #allocation10 [shape = 'u8[131072]{0}', space=vmem, size = 0x20000, scoped, tag = 'input window, operand 4, single buffered']
    #allocation11 [shape = 'u8[8192]{0}', space=vmem, size = 0x2000, scoped, tag = 'input window, operand 5, single buffered']
    #allocation12 [shape = 's32[1]{0}', space=sflag, size = 0x4, scoped, tag = 'scoped memory for tpu_custom_call.1']
    #allocation13 [shape = 'u8[4096]{0}', space=vmem, size = 0x1000, scoped, tag = 'output window, operand 0, single buffered']
    %11 = vsyncpa [#allocation3], 0
    %12 = vsyncpa [#allocation6], 0
    %13 = vsyncpa [#allocation9], 0
    %14 = vsyncpa [#allocation12], 0
    %15 = vsyncpa [#allocation4], 0
    // Predicated region
    $region2: #{tpu_custom_call.1} parent=1 // pred_check
      _
    $region3: #{tpu_custom_call.1} parent=1 // pred_check_branch
      %17 = sbr.rel (0) target = $region5
    $region4: #{tpu_custom_call.1} parent=1 // pred_region
      %19 = vsyncadd [#allocation3], 0
      %s21 = sshll.u32 %s0, 4
      %s22 = int_to_ptr.hbm [resolvable:$true] %s21
      %s23 = sshll.u32 [#allocation2], 4
      %s24 = int_to_ptr.vmem [resolvable:$true] %s23
      %26 = dma.hbm_to_vmem [thread:$0]  %s22, 128, %s24, [#allocation3]
    $region5: #{tpu_custom_call.1} parent=1 // pred_fallthru
      _
    // Predicated region
    $region6: #{tpu_custom_call.1} parent=1 // pred_check
      _
    $region7: #{tpu_custom_call.1} parent=1 // pred_check_branch
      %28 = sbr.rel (0) target = $region9
    $region8: #{tpu_custom_call.1} parent=1 // pred_region
      %30 = vsyncadd [#allocation6], 0
      %s31 = sshll.u32 %s1, 4
      %s32 = int_to_ptr.hbm [resolvable:$true] %s31
      %s33 = sshll.u32 [#allocation5], 4
      %s34 = int_to_ptr.vmem [resolvable:$true] %s33
      %39 = dma.hbm_to_vmem [thread:$0]  %s32, 256, %s34, [#allocation6], 128, 128, 8
    $region9: #{tpu_custom_call.1} parent=1 // pred_fallthru
      _
    // Predicated region
    $region10: #{tpu_custom_call.1} parent=1 // pred_check
      _
    $region11: #{tpu_custom_call.1} parent=1 // pred_check_branch
      %41 = sbr.rel (0) target = $region13
    $region12: #{tpu_custom_call.1} parent=1 // pred_region
      %43 = vsyncadd [#allocation6], 0
      %s44 = sshll.u32 %s2, 4
      %s45 = int_to_ptr.hbm [resolvable:$true] %s44
      %s46 = sshll.u32 [#allocation7], 4
      %s47 = int_to_ptr.vmem [resolvable:$true] %s46
      %52 = dma.hbm_to_vmem [thread:$0]  %s45, 6144, %s47, [#allocation6], 128, 128, 8
    $region13: #{tpu_custom_call.1} parent=1 // pred_fallthru
      _
    // Predicated region
    $region14: #{tpu_custom_call.1} parent=1 // pred_check
      _
    $region15: #{tpu_custom_call.1} parent=1 // pred_check_branch
      %54 = sbr.rel (0) target = $region17
    $region16: #{tpu_custom_call.1} parent=1 // pred_region
      %56 = vsyncadd [#allocation9], 0
      %s57 = sshll.u32 %s3, 4
      %s58 = int_to_ptr.hbm [resolvable:$true] %s57
      %s59 = sshll.u32 [#allocation8], 4
      %s60 = int_to_ptr.vmem [resolvable:$true] %s59
      %65 = dma.hbm_to_vmem [thread:$0]  %s58, 4096, %s60, [#allocation9], 256, 256, 16
    $region17: #{tpu_custom_call.1} parent=1 // pred_fallthru
      _
    // Predicated region
    $region18: #{tpu_custom_call.1} parent=1 // pred_check
      _
    $region19: #{tpu_custom_call.1} parent=1 // pred_check_branch
      %67 = sbr.rel (0) target = $region21
    $region20: #{tpu_custom_call.1} parent=1 // pred_region
      %69 = vsyncadd [#allocation9], 0
      %s70 = sshll.u32 %s4, 4
      %s71 = int_to_ptr.hbm [resolvable:$true] %s70
      %s72 = sshll.u32 [#allocation10], 4
      %s73 = int_to_ptr.vmem [resolvable:$true] %s72
      %78 = dma.hbm_to_vmem [thread:$0]  %s71, 4096, %s73, [#allocation9], 128, 128, 8
    $region21: #{tpu_custom_call.1} parent=1 // pred_fallthru
      _
    // Predicated region
    $region22: #{tpu_custom_call.1} parent=1 // pred_check
      _
    $region23: #{tpu_custom_call.1} parent=1 // pred_check_branch
      %80 = sbr.rel (0) target = $region25
    $region24: #{tpu_custom_call.1} parent=1 // pred_region
      %82 = vsyncadd [#allocation12], 0
      %s84 = sshll.u32 %s5, 4
      %s85 = int_to_ptr.hbm [resolvable:$true] %s84
      %s86 = sshll.u32 [#allocation11], 4
      %s87 = int_to_ptr.vmem [resolvable:$true] %s86
      %89 = dma.hbm_to_vmem [thread:$0]  %s85, 256, %s87, [#allocation12]
    $region25: #{tpu_custom_call.1} parent=1 // pred_fallthru
      _
    // Predicated region
    $region26: #{tpu_custom_call.1} parent=1 // pred_check
      _
    $region27: #{tpu_custom_call.1} parent=1 // pred_check_branch
      %91 = sbr.rel (0) target = $region29
    $region28: #{tpu_custom_call.1} parent=1 // pred_region
      %93 = dma.done [#allocation3], 128
    $region29: #{tpu_custom_call.1} parent=1 // pred_fallthru
      _
    // Predicated region
    $region30: #{tpu_custom_call.1} parent=1 // pred_check
      _
    $region31: #{tpu_custom_call.1} parent=1 // pred_check_branch
      %95 = sbr.rel (0) target = $region33
    $region32: #{tpu_custom_call.1} parent=1 // pred_region
      %97 = dma.done [#allocation6], 256
    $region33: #{tpu_custom_call.1} parent=1 // pred_fallthru
      _
    // Predicated region
    $region34: #{tpu_custom_call.1} parent=1 // pred_check
      _
    $region35: #{tpu_custom_call.1} parent=1 // pred_check_branch
      %99 = sbr.rel (0) target = $region37
    $region36: #{tpu_custom_call.1} parent=1 // pred_region
      %101 = dma.done [#allocation6], 6144
    $region37: #{tpu_custom_call.1} parent=1 // pred_fallthru
      _
    // Predicated region
    $region38: #{tpu_custom_call.1} parent=1 // pred_check
      _
    $region39: #{tpu_custom_call.1} parent=1 // pred_check_branch
      %103 = sbr.rel (0) target = $region41
    $region40: #{tpu_custom_call.1} parent=1 // pred_region
      %105 = dma.done [#allocation9], 4096
    $region41: #{tpu_custom_call.1} parent=1 // pred_fallthru
      _
    // Predicated region
    $region42: #{tpu_custom_call.1} parent=1 // pred_check
      _
    $region43: #{tpu_custom_call.1} parent=1 // pred_check_branch
      %107 = sbr.rel (0) target = $region45
    $region44: #{tpu_custom_call.1} parent=1 // pred_region
      %109 = dma.done [#allocation9], 4096
    $region45: #{tpu_custom_call.1} parent=1 // pred_fallthru
      _
    // Predicated region
    $region46: #{tpu_custom_call.1} parent=1 // pred_check
      _
    $region47: #{tpu_custom_call.1} parent=1 // pred_check_branch
      %111 = sbr.rel (0) target = $region49
    $region48: #{tpu_custom_call.1} parent=1 // pred_region
      %113 = dma.done [#allocation12], 256
    $region49: #{tpu_custom_call.1} parent=1 // pred_fallthru
      _
    %v114 = vld [vmem:[#allocation2] sm:$0xff]
    %v115 = vld [vmem:[#allocation5] sm:$0xff]
    %v116 = vld [vmem:[#allocation5 + $0x8] sm:$0xff]
    %v117 = vld [vmem:[#allocation11] ss:$0 sm:$0xff]
    %vm118 = vcmask 130048
    %v120 = vsel %vm118, %v114, 0
    %122 = vmatpush.msra.mxu0 0.0
    %123 = vmatpush.msra.mxu0 0.0
    %124 = vmatpush.msra.mxu0 0.0
    %125 = vmatpush.msra.mxu0 0.0
    %126 = vmatpush.msra.mxu0 0.0
    %127 = vmatpush.msra.mxu0 0.0
    %128 = vmatpush.msra.mxu0 0.0
    %129 = vmatpush.msra.mxu0 0.0
    %130 = vmatpush.msra.mxu0 0.0
    %131 = vmatpush.msra.mxu0 0.0
    %132 = vmatpush.msra.mxu0 0.0
    %133 = vmatpush.msra.mxu0 0.0
    %134 = vmatpush.msra.mxu0 0.0
    %135 = vmatpush.msra.mxu0 0.0
    %136 = vmatpush.msra.mxu0 %v116
    %137 = vmatpush.msra.mxu0 %v115
    %138 = vmatmul.f32.gmra.mxu0 %v120
    %v139 = vpop.f32.mrf.mxu0
    %v140 = vadd.f32 %v117, %v139
    %141 = vdwg.mxu0
    %v142 = vmax.f32 %v140, 0.0
    %v143 = vld [vmem:[#allocation7] sm:$0xff]
    %v144 = vld [vmem:[#allocation7 + $0x8] sm:$0xff]
    %v145 = vld [vmem:[#allocation7 + $0x10] sm:$0xff]
    %v146 = vld [vmem:[#allocation7 + $0x18] sm:$0xff]
    %v147 = vld [vmem:[#allocation7 + $0x20] sm:$0xff]
    %v148 = vld [vmem:[#allocation7 + $0x28] sm:$0xff]
    %v149 = vld [vmem:[#allocation7 + $0x30] sm:$0xff]
    %v150 = vld [vmem:[#allocation7 + $0x38] sm:$0xff]
    %v151 = vld [vmem:[#allocation7 + $0x40] sm:$0xff]
    %v152 = vld [vmem:[#allocation7 + $0x48] sm:$0xff]
    %v153 = vld [vmem:[#allocation7 + $0x50] sm:$0xff]
    %v154 = vld [vmem:[#allocation7 + $0x58] sm:$0xff]
    %v155 = vld [vmem:[#allocation7 + $0x60] sm:$0xff]
    %v156 = vld [vmem:[#allocation7 + $0x68] sm:$0xff]
    %v157 = vld [vmem:[#allocation7 + $0x70] sm:$0xff]
    %v158 = vld [vmem:[#allocation7 + $0x78] sm:$0xff]
    %v159 = vld [vmem:[#allocation11 + $0x1] ss:$0 sm:$0xff]
    %160 = vmatpush.msra.mxu0 %v158
    %161 = vmatpush.msra.mxu0 %v157
    %162 = vmatpush.msra.mxu0 %v156
    %163 = vmatpush.msra.mxu0 %v155
    %164 = vmatpush.msra.mxu0 %v154
    %165 = vmatpush.msra.mxu0 %v153
    %166 = vmatpush.msra.mxu0 %v152
    %167 = vmatpush.msra.mxu0 %v151
    %168 = vmatpush.msra.mxu0 %v150
    %169 = vmatpush.msra.mxu0 %v149
    %170 = vmatpush.msra.mxu0 %v148
    %171 = vmatpush.msra.mxu0 %v147
    %172 = vmatpush.msra.mxu0 %v146
    %173 = vmatpush.msra.mxu0 %v145
    %174 = vmatpush.msra.mxu0 %v144
    %175 = vmatpush.msra.mxu0 %v143
    %176 = vmatmul.f32.gmra.mxu0 %v142
    %v177 = vpop.f32.mrf.mxu0
    %v178 = vadd.f32 %v159, %v177
    %179 = vdwg.mxu0
    %v180 = vmax.f32 %v178, 0.0
    %v181 = vld [vmem:[#allocation8] sm:$0xff]
    %v182 = vld [vmem:[#allocation8 + $0x8] sm:$0xff]
    %v183 = vld [vmem:[#allocation8 + $0x10] sm:$0xff]
    %v184 = vld [vmem:[#allocation8 + $0x18] sm:$0xff]
    %v185 = vld [vmem:[#allocation8 + $0x20] sm:$0xff]
    %v186 = vld [vmem:[#allocation8 + $0x28] sm:$0xff]
    %v187 = vld [vmem:[#allocation8 + $0x30] sm:$0xff]
    %v188 = vld [vmem:[#allocation8 + $0x38] sm:$0xff]
    %v189 = vld [vmem:[#allocation8 + $0x40] sm:$0xff]
    %v190 = vld [vmem:[#allocation8 + $0x48] sm:$0xff]
    %v191 = vld [vmem:[#allocation8 + $0x50] sm:$0xff]
    %v192 = vld [vmem:[#allocation8 + $0x58] sm:$0xff]
    %v193 = vld [vmem:[#allocation8 + $0x60] sm:$0xff]
    %v194 = vld [vmem:[#allocation8 + $0x68] sm:$0xff]
    %v195 = vld [vmem:[#allocation8 + $0x70] sm:$0xff]
    %v196 = vld [vmem:[#allocation8 + $0x78] sm:$0xff]
    %v197 = vld [vmem:[#allocation8 + $0x80] sm:$0xff]
    %v198 = vld [vmem:[#allocation8 + $0x88] sm:$0xff]
    %v199 = vld [vmem:[#allocation8 + $0x90] sm:$0xff]
    %v200 = vld [vmem:[#allocation8 + $0x98] sm:$0xff]
    %v201 = vld [vmem:[#allocation8 + $0xa0] sm:$0xff]
    %v202 = vld [vmem:[#allocation8 + $0xa8] sm:$0xff]
    %v203 = vld [vmem:[#allocation8 + $0xb0] sm:$0xff]
    %v204 = vld [vmem:[#allocation8 + $0xb8] sm:$0xff]
    %v205 = vld [vmem:[#allocation8 + $0xc0] sm:$0xff]
    %v206 = vld [vmem:[#allocation8 + $0xc8] sm:$0xff]
    %v207 = vld [vmem:[#allocation8 + $0xd0] sm:$0xff]
    %v208 = vld [vmem:[#allocation8 + $0xd8] sm:$0xff]
    %v209 = vld [vmem:[#allocation8 + $0xe0] sm:$0xff]
    %v210 = vld [vmem:[#allocation8 + $0xe8] sm:$0xff]
    %v211 = vld [vmem:[#allocation8 + $0xf0] sm:$0xff]
    %v212 = vld [vmem:[#allocation8 + $0xf8] sm:$0xff]
    %s213 = scalar_lea.vmem [#allocation11], 2
    %v214 = vld [vmem:[%s213] ss:$8 sm:$0x3]
    %v216 = vperm.slane %v214, 0
    %v217 = vperm.slane %v214, 1
    %220 = vmatpush.msra.mxu0 %v211
    %221 = vmatpush.msra.mxu0 %v209
    %222 = vmatpush.msra.mxu0 %v207
    %223 = vmatpush.msra.mxu0 %v205
    %224 = vmatpush.msra.mxu0 %v203
    %225 = vmatpush.msra.mxu0 %v201
    %226 = vmatpush.msra.mxu0 %v199
    %227 = vmatpush.msra.mxu0 %v197
    %228 = vmatpush.msra.mxu0 %v195
    %229 = vmatpush.msra.mxu0 %v193
    %230 = vmatpush.msra.mxu0 %v191
    %231 = vmatpush.msra.mxu0 %v189
    %232 = vmatpush.msra.mxu0 %v187
    %233 = vmatpush.msra.mxu0 %v185
    %234 = vmatpush.msra.mxu0 %v183
    %235 = vmatpush.msra.mxu0 %v181
    %236 = vmatmul.f32.gmra.mxu0 %v180
    %v237 = vpop.f32.mrf.mxu0
    %v238 = vadd.f32 %v216, %v237
    %239 = vdwg.mxu0
    %240 = vmatpush.msra.mxu0 %v212
    %241 = vmatpush.msra.mxu0 %v210
    %242 = vmatpush.msra.mxu0 %v208
    %243 = vmatpush.msra.mxu0 %v206
    %244 = vmatpush.msra.mxu0 %v204
    %245 = vmatpush.msra.mxu0 %v202
    %246 = vmatpush.msra.mxu0 %v200
    %247 = vmatpush.msra.mxu0 %v198
    %248 = vmatpush.msra.mxu0 %v196
    %249 = vmatpush.msra.mxu0 %v194
    %250 = vmatpush.msra.mxu0 %v192
    %251 = vmatpush.msra.mxu0 %v190
    %252 = vmatpush.msra.mxu0 %v188
    %253 = vmatpush.msra.mxu0 %v186
    %254 = vmatpush.msra.mxu0 %v184
    %255 = vmatpush.msra.mxu0 %v182
    %256 = vmatmul.f32.gmra.mxu0 %v180
    %v257 = vpop.f32.mrf.mxu0
    %v258 = vadd.f32 %v217, %v257
    %259 = vdwg.mxu0
    %v260 = vmax.f32 %v238, 0.0
    %v261 = vmax.f32 %v258, 0.0
    %v262 = vld [vmem:[#allocation10] sm:$0xff]
    %v263 = vld [vmem:[#allocation10 + $0x8] sm:$0xff]
    %v264 = vld [vmem:[#allocation10 + $0x10] sm:$0xff]
    %v265 = vld [vmem:[#allocation10 + $0x18] sm:$0xff]
    %v266 = vld [vmem:[#allocation10 + $0x20] sm:$0xff]
    %v267 = vld [vmem:[#allocation10 + $0x28] sm:$0xff]
    %v268 = vld [vmem:[#allocation10 + $0x30] sm:$0xff]
    %v269 = vld [vmem:[#allocation10 + $0x38] sm:$0xff]
    %v270 = vld [vmem:[#allocation10 + $0x40] sm:$0xff]
    %v271 = vld [vmem:[#allocation10 + $0x48] sm:$0xff]
    %v272 = vld [vmem:[#allocation10 + $0x50] sm:$0xff]
    %v273 = vld [vmem:[#allocation10 + $0x58] sm:$0xff]
    %v274 = vld [vmem:[#allocation10 + $0x60] sm:$0xff]
    %v275 = vld [vmem:[#allocation10 + $0x68] sm:$0xff]
    %v276 = vld [vmem:[#allocation10 + $0x70] sm:$0xff]
    %v277 = vld [vmem:[#allocation10 + $0x78] sm:$0xff]
    %v278 = vld [vmem:[#allocation10 + $0x80] sm:$0xff]
    %v279 = vld [vmem:[#allocation10 + $0x88] sm:$0xff]
    %v280 = vld [vmem:[#allocation10 + $0x90] sm:$0xff]
    %v281 = vld [vmem:[#allocation10 + $0x98] sm:$0xff]
    %v282 = vld [vmem:[#allocation10 + $0xa0] sm:$0xff]
    %v283 = vld [vmem:[#allocation10 + $0xa8] sm:$0xff]
    %v284 = vld [vmem:[#allocation10 + $0xb0] sm:$0xff]
    %v285 = vld [vmem:[#allocation10 + $0xb8] sm:$0xff]
    %v286 = vld [vmem:[#allocation10 + $0xc0] sm:$0xff]
    %v287 = vld [vmem:[#allocation10 + $0xc8] sm:$0xff]
    %v288 = vld [vmem:[#allocation10 + $0xd0] sm:$0xff]
    %v289 = vld [vmem:[#allocation10 + $0xd8] sm:$0xff]
    %v290 = vld [vmem:[#allocation10 + $0xe0] sm:$0xff]
    %v291 = vld [vmem:[#allocation10 + $0xe8] sm:$0xff]
    %v292 = vld [vmem:[#allocation10 + $0xf0] sm:$0xff]
    %v293 = vld [vmem:[#allocation10 + $0xf8] sm:$0xff]
    %v294 = vld [vmem:[#allocation11 + $0x3] ss:$0 sm:$0xff]
    %295 = vmatpush.msra.mxu0 %v277
    %296 = vmatpush.msra.mxu0 %v276
    %297 = vmatpush.msra.mxu0 %v275
    %298 = vmatpush.msra.mxu0 %v274
    %299 = vmatpush.msra.mxu0 %v273
    %300 = vmatpush.msra.mxu0 %v272
    %301 = vmatpush.msra.mxu0 %v271
    %302 = vmatpush.msra.mxu0 %v270
    %303 = vmatpush.msra.mxu0 %v269
    %304 = vmatpush.msra.mxu0 %v268
    %305 = vmatpush.msra.mxu0 %v267
    %306 = vmatpush.msra.mxu0 %v266
    %307 = vmatpush.msra.mxu0 %v265
    %308 = vmatpush.msra.mxu0 %v264
    %309 = vmatpush.msra.mxu0 %v263
    %310 = vmatpush.msra.mxu0 %v262
    %311 = vmatmul.f32.gmra.mxu0 %v260
    %v312 = vpop.f32.mrf.mxu0
    %v313 = vadd.f32 %v294, %v312
    %314 = vdwg.mxu0
    %315 = vmatpush.msra.mxu0 %v293
    %316 = vmatpush.msra.mxu0 %v292
    %317 = vmatpush.msra.mxu0 %v291
    %318 = vmatpush.msra.mxu0 %v290
    %319 = vmatpush.msra.mxu0 %v289
    %320 = vmatpush.msra.mxu0 %v288
    %321 = vmatpush.msra.mxu0 %v287
    %322 = vmatpush.msra.mxu0 %v286
    %323 = vmatpush.msra.mxu0 %v285
    %324 = vmatpush.msra.mxu0 %v284
    %325 = vmatpush.msra.mxu0 %v283
    %326 = vmatpush.msra.mxu0 %v282
    %327 = vmatpush.msra.mxu0 %v281
    %328 = vmatpush.msra.mxu0 %v280
    %329 = vmatpush.msra.mxu0 %v279
    %330 = vmatpush.msra.mxu0 %v278
    %331 = vmatmul.f32.gmra.mxu0 %v261
    %v332 = vpop.f32.mrf.mxu0
    %v333 = vadd.f32 %v313, %v332
    %334 = vdwg.mxu0
    %v335 = vmax.f32 %v333, 0.0
    %v336 = vld [vmem:[#allocation7 + $0x80] sm:$0xff]
    %v337 = vld [vmem:[#allocation7 + $0x88] sm:$0xff]
    %v338 = vld [vmem:[#allocation7 + $0x90] sm:$0xff]
    %v339 = vld [vmem:[#allocation7 + $0x98] sm:$0xff]
    %v340 = vld [vmem:[#allocation7 + $0xa0] sm:$0xff]
    %v341 = vld [vmem:[#allocation7 + $0xa8] sm:$0xff]
    %v342 = vld [vmem:[#allocation7 + $0xb0] sm:$0xff]
    %v343 = vld [vmem:[#allocation7 + $0xb8] sm:$0xff]
    %v344 = vld [vmem:[#allocation7 + $0xc0] sm:$0xff]
    %v345 = vld [vmem:[#allocation7 + $0xc8] sm:$0xff]
    %v346 = vld [vmem:[#allocation7 + $0xd0] sm:$0xff]
    %v347 = vld [vmem:[#allocation7 + $0xd8] sm:$0xff]
    %v348 = vld [vmem:[#allocation7 + $0xe0] sm:$0xff]
    %v349 = vld [vmem:[#allocation7 + $0xe8] sm:$0xff]
    %v350 = vld [vmem:[#allocation7 + $0xf0] sm:$0xff]
    %v351 = vld [vmem:[#allocation7 + $0xf8] sm:$0xff]
    %v352 = vld [vmem:[#allocation11 + $0x4] ss:$0 sm:$0xff]
    %353 = vmatpush.msra.mxu0 %v351
    %354 = vmatpush.msra.mxu0 %v350
    %355 = vmatpush.msra.mxu0 %v349
    %356 = vmatpush.msra.mxu0 %v348
    %357 = vmatpush.msra.mxu0 %v347
    %358 = vmatpush.msra.mxu0 %v346
    %359 = vmatpush.msra.mxu0 %v345
    %360 = vmatpush.msra.mxu0 %v344
    %361 = vmatpush.msra.mxu0 %v343
    %362 = vmatpush.msra.mxu0 %v342
    %363 = vmatpush.msra.mxu0 %v341
    %364 = vmatpush.msra.mxu0 %v340
    %365 = vmatpush.msra.mxu0 %v339
    %366 = vmatpush.msra.mxu0 %v338
    %367 = vmatpush.msra.mxu0 %v337
    %368 = vmatpush.msra.mxu0 %v336
    %369 = vmatmul.f32.gmra.mxu0 %v335
    %v370 = vpop.f32.mrf.mxu0
    %v371 = vadd.f32 %v352, %v370
    %372 = vdwg.mxu0
    %v373 = vmax.f32 %v371, 0.0
    %v374 = vld [vmem:[#allocation7 + $0x100] sm:$0xff]
    %v375 = vld [vmem:[#allocation7 + $0x108] sm:$0xff]
    %v376 = vld [vmem:[#allocation7 + $0x110] sm:$0xff]
    %v377 = vld [vmem:[#allocation7 + $0x118] sm:$0xff]
    %v378 = vld [vmem:[#allocation7 + $0x120] sm:$0xff]
    %v379 = vld [vmem:[#allocation7 + $0x128] sm:$0xff]
    %v380 = vld [vmem:[#allocation7 + $0x130] sm:$0xff]
    %v381 = vld [vmem:[#allocation7 + $0x138] sm:$0xff]
    %v382 = vld [vmem:[#allocation7 + $0x140] sm:$0xff]
    %v383 = vld [vmem:[#allocation7 + $0x148] sm:$0xff]
    %v384 = vld [vmem:[#allocation7 + $0x150] sm:$0xff]
    %v385 = vld [vmem:[#allocation7 + $0x158] sm:$0xff]
    %v386 = vld [vmem:[#allocation7 + $0x160] sm:$0xff]
    %v387 = vld [vmem:[#allocation7 + $0x168] sm:$0xff]
    %v388 = vld [vmem:[#allocation7 + $0x170] sm:$0xff]
    %v389 = vld [vmem:[#allocation7 + $0x178] sm:$0xff]
    %v390 = vld [vmem:[#allocation11 + $0x5] ss:$0 sm:$0xff]
    %391 = vmatpush.msra.mxu0 %v389
    %392 = vmatpush.msra.mxu0 %v388
    %393 = vmatpush.msra.mxu0 %v387
    %394 = vmatpush.msra.mxu0 %v386
    %395 = vmatpush.msra.mxu0 %v385
    %396 = vmatpush.msra.mxu0 %v384
    %397 = vmatpush.msra.mxu0 %v383
    %398 = vmatpush.msra.mxu0 %v382
    %399 = vmatpush.msra.mxu0 %v381
    %400 = vmatpush.msra.mxu0 %v380
    %401 = vmatpush.msra.mxu0 %v379
    %402 = vmatpush.msra.mxu0 %v378
    %403 = vmatpush.msra.mxu0 %v377
    %404 = vmatpush.msra.mxu0 %v376
    %405 = vmatpush.msra.mxu0 %v375
    %406 = vmatpush.msra.mxu0 %v374
    %407 = vmatmul.f32.gmra.mxu0 %v373
    %v408 = vpop.f32.mrf.mxu0
    %v409 = vadd.f32 %v390, %v408
    %410 = vdwg.mxu0
    %411 = vst [vmem:[#allocation13] sm:$0xff] %v409
    // Predicated region
    $region50: #{tpu_custom_call.1} parent=1 // pred_check
      _
    $region51: #{tpu_custom_call.1} parent=1 // pred_check_branch
      %413 = sbr.rel (0) target = $region53
    $region52: #{tpu_custom_call.1} parent=1 // pred_region
      %415 = vsyncadd [#allocation4], 0
      %s417 = sshll.u32 [#allocation13], 4
      %s418 = int_to_ptr.vmem [resolvable:$true] %s417
      %s419 = sshll.u32 %s6, 4
      %s420 = int_to_ptr.hbm [resolvable:$true] %s419
      %422 = dma.vmem_to_hbm [thread:$0]  %s418, 128, %s420, [#allocation4]
    $region53: #{tpu_custom_call.1} parent=1 // pred_fallthru
      _
    // Predicated region
    $region54: #{tpu_custom_call.1} parent=1 // pred_check
      _
    $region55: #{tpu_custom_call.1} parent=1 // pred_check_branch
      %424 = sbr.rel (0) target = $region57
    $region56: #{tpu_custom_call.1} parent=1 // pred_region
      %426 = dma.done [#allocation4], 128
    $region57: #{tpu_custom_call.1} parent=1 // pred_fallthru
      _
    %427 = vsyncpa [#allocation3], 1
    %428 = vsyncpa [#allocation6], 1
    %429 = vsyncpa [#allocation9], 1
    %430 = vsyncpa [#allocation12], 1
    %431 = vsyncpa [#allocation4], 1

</llo_original>
